<compile_context>
chip_gen: v6e
topology: v6e:2x2x1
jax: 0.10.0
libtpu: 0.0.40
codegen_flags: <defaults>
</compile_context>

<pallas_src>
import functools
import math

import numpy as np
import jax
import jax.numpy as jnp
from jax import lax
from jax.experimental import pallas as pl
from jax.experimental.pallas import tpu as pltpu

# ----------------------------- configuration --------------------------------------
B = 2                                # batch
FPN_C = 64                           # fpn_channels
OUT_H, OUT_W = 8, 8                  # output_size
C_IN0, IN_H0, IN_W0 = 40, 16, 16     # edge 0 feature (1x1 conv + 3x3/s2/p1 max-pool)
C_IN2, IN_H2, IN_W2 = 112, 4, 4      # edge 2 feature (1x1 conv + nearest 2x upsample)
N_OUT = B * OUT_H * OUT_W            # 128 output "tokens" -> exactly one full lane width


def _nearest_upsample_selection():
    """(B*4*4, B*8*8) 0/1 matrix: out lane (b,ho,wo) <- in lane (b, ho//2, wo//2)."""
    l = np.arange(N_OUT)
    b, rem = l // (OUT_H * OUT_W), l % (OUT_H * OUT_W)
    ho, wo = rem // OUT_W, rem % OUT_W
    src = b * (IN_H2 * IN_W2) + (ho // 2) * IN_W2 + (wo // 2)
    return (np.arange(B * IN_H2 * IN_W2)[:, None] == src[None, :]).astype(np.float32)


_UPSAMPLE_SEL_NP = _nearest_upsample_selection()     # 32 x 128, host constant


# ------------------------------- kernel --------------------------------------------
def fpn_combine_kernel(nw_ref, x0_ref, w0_ref, b0_ref, x1_ref, x2_ref, w2_ref, b2_ref,
                       usel_ref, o_ref, *, oh, ow, nb):
    """Whole combine node on (channels x tokens) slabs; single invocation, no grid."""
    f32 = jnp.float32
    n_out = nb * oh * ow                                    # 128 lanes per phase plane

    # ---- edge 0: 1x1 conv (softmax weight pre-folded into w0/b0) --------------------
    # x0 lanes are phase-major: lane = (dh*2+dw)*n_out + b*oh*ow + ho*ow + wo, where the
    # input pixel is (h, w) = (2*ho+dh, 2*wo+dw).  bf16 operands, f32 accumulate.
    y0 = jnp.dot(w0_ref[...], x0_ref[...], preferred_element_type=f32) + b0_ref[...]
    p00 = y0[:, 0 * n_out:1 * n_out]                        # 128-aligned lane slices (free)
    p01 = y0[:, 1 * n_out:2 * n_out]
    p10 = y0[:, 2 * n_out:3 * n_out]
    p11 = y0[:, 3 * n_out:4 * n_out]

    # 3x3 / stride-2 / pad-1 max pool on the phase planes: the window of output (ho, wo)
    # is the full 2x2 block (ho,wo) plus the dh=1 row of block (ho-1,*), the dw=1 col of
    # block (*,wo-1) and the (dh,dw)=(1,1) pixel of block (ho-1,wo-1).  The shifted taps
    # are lane rolls by ow / 1 / ow+1; top/left padding is handled by boundary masks
    # (substituting an already-included tap, exact for max).
    lane = lax.broadcasted_iota(jnp.int32, p00.shape, 1)
    has_up = (lane % (oh * ow)) >= ow                       # output row  > 0
    has_left = (lane % ow) >= 1                             # output col  > 0

    m = jnp.maximum(jnp.maximum(p00, p01), jnp.maximum(p10, p11))
    tap_up = pltpu.roll(jnp.maximum(p10, p11), ow, 1)       # from block (ho-1, wo)
    tap_left = pltpu.roll(jnp.maximum(p01, p11), 1, 1)      # from block (ho, wo-1)
    tap_diag = pltpu.roll(p11, ow + 1, 1)                   # from block (ho-1, wo-1)
    m = jnp.maximum(m, jnp.where(has_up, tap_up, m))
    m = jnp.maximum(m, jnp.where(has_left, tap_left, m))
    z0 = jnp.maximum(m, jnp.where(has_up & has_left, tap_diag, m))

    # ---- edge 1: identity resample; softmax weight read from SMEM -------------------
    z1 = nw_ref[1] * x1_ref[...]

    # ---- edge 2: 1x1 conv (pre-folded) + nearest 2x upsample (tiny constant one-hot) -
    y2 = jnp.dot(w2_ref[...], x2_ref[...], preferred_element_type=f32) + b2_ref[...]
    z2 = jnp.dot(y2, usel_ref[...].astype(f32), preferred_element_type=f32)  # exact select

    o_ref[...] = z0 + z1 + z2                               # (64, 128): full-width stores


# ------------------------------- wrapper --------------------------------------------
def fpn_combine(x0, x1, x2, params):
    """FpnCombine.forward (weight_method='attn'); NCHW in / NCHW out like PyTorch."""
    nw = jax.nn.softmax(params["edge_weights"].astype(jnp.float32))

    # Fold softmax(edge_weights) into the 1x1-conv weights/bias.  Exact: softmax weights are
    # strictly positive, and max-pool / nearest-upsample commute with positive scaling.
    w0t = (params["w0"] * nw[0]).T.astype(jnp.bfloat16)          # (FPN_C, C_IN0)
    b0 = (params["b0"] * nw[0]).reshape(FPN_C, 1)                # f32, lane-broadcast
    w2t = (params["w2"] * nw[2]).T.astype(jnp.bfloat16)          # (FPN_C, C_IN2)
    b2 = (params["b2"] * nw[2]).reshape(FPN_C, 1)

    # Channels-in-sublanes / spatial-in-lanes slabs.  x0 is additionally 2x2 space-to-depth
    # split (phase-major lanes) so the max-pool needs only aligned slices + rolls in-kernel.
    x0_p = x0.reshape(B, C_IN0, OUT_H, 2, OUT_W, 2)              # (b, c, ho, dh, wo, dw)
    x0_p = jnp.transpose(x0_p, (1, 3, 5, 0, 2, 4))               # (c, dh, dw, b, ho, wo)
    x0_p = x0_p.reshape(C_IN0, 4 * N_OUT).astype(jnp.bfloat16)   # (40, 512)
    x1_t = jnp.transpose(x1, (1, 0, 2, 3)).reshape(FPN_C, N_OUT)                 # (64, 128) f32
    x2_t = jnp.transpose(x2, (1, 0, 2, 3)).reshape(C_IN2, B * IN_H2 * IN_W2)
    x2_t = x2_t.astype(jnp.bfloat16)                                              # (112, 32)
    usel = jnp.asarray(_UPSAMPLE_SEL_NP).astype(jnp.bfloat16)                     # (32, 128)

    kernel = functools.partial(fpn_combine_kernel, oh=OUT_H, ow=OUT_W, nb=B)
    vmem = pl.BlockSpec(memory_space=pltpu.MemorySpace.VMEM)
    smem = pl.BlockSpec(memory_space=pltpu.MemorySpace.SMEM)
    out2d = pl.pallas_call(
        kernel,
        out_shape=jax.ShapeDtypeStruct((FPN_C, N_OUT), jnp.float32),
        in_specs=[smem,                     # softmax(edge_weights), scalar read in-kernel
                  vmem, vmem, vmem,         # x0, w0^T, b0
                  vmem,                     # x1
                  vmem, vmem, vmem,         # x2, w2^T, b2
                  vmem],                    # upsample selection constant
        out_specs=vmem,
    )(nw, x0_p, w0t, b0, x1_t, x2_t, w2t, b2, usel)

    out = out2d.reshape(FPN_C, B, OUT_H, OUT_W)
    return jnp.transpose(out, (1, 0, 2, 3))                      # NCHW


# ------------------------------- reference ------------------------------------------
def fpn_combine_reference(x0, x1, x2, params):
    """Plain-JAX f32 reference with the PyTorch FpnCombine semantics (weight_method='attn')."""
    nw = jax.nn.softmax(params["edge_weights"])
    # edge 0: ConvBnAct2d(1x1, bias, no bn/act) then MaxPool2d(kernel=3, stride=2, padding=1)
    y0 = jnp.einsum("bchw,cd->bdhw", x0, params["w0"]) + params["b0"][None, :, None, None]
    y0 = lax.reduce_window(y0, -jnp.inf, lax.max,
                           window_dimensions=(1, 1, 3, 3),
                           window_strides=(1, 1, 2, 2),
                           padding=((0, 0), (0, 0), (1, 1), (1, 1)))
    # edge 1: identity
    y1 = x1
    # edge 2: 1x1 conv then F.interpolate(size=(8,8), mode='nearest')
    y2 = jnp.einsum("bchw,cd->bdhw", x2, params["w2"]) + params["b2"][None, :, None, None]
    y2 = jnp.repeat(jnp.repeat(y2, 2, axis=2), 2, axis=3)
    return nw[0] * y0 + nw[1] * y1 + nw[2] * y2


# --------------------------------- main ----------------------------------------------
if __name__ == "__main__":
    key = jax.random.PRNGKey(0)
    k = jax.random.split(key, 8)
    params = {
        # ResampleFeatureMap 1x1-conv weights stored as (C_in, C_out); bias (C_out,)
        "w0": jax.random.normal(k[0], (C_IN0, FPN_C), jnp.float32) / math.sqrt(C_IN0),
        "b0": 0.1 * jax.random.normal(k[1], (FPN_C,), jnp.float32),
        "w2": jax.random.normal(k[2], (C_IN2, FPN_C), jnp.float32) / math.sqrt(C_IN2),
        "b2": 0.1 * jax.random.normal(k[3], (FPN_C,), jnp.float32),
        # nn.Parameter(torch.ones(n_edges)) at init; random here to exercise the softmax fold
        "edge_weights": jax.random.normal(k[4], (3,), jnp.float32),
    }
    x0 = jax.random.normal(k[5], (B, C_IN0, IN_H0, IN_W0), jnp.float32)
    x1 = jax.random.normal(k[6], (B, FPN_C, OUT_H, OUT_W), jnp.float32)
    x2 = jax.random.normal(k[7], (B, C_IN2, IN_H2, IN_W2), jnp.float32)

    fwd = jax.jit(lambda a, b, c: fpn_combine(a, b, c, params))
    out = jax.block_until_ready(fwd(x0, x1, x2))

    assert out.shape == (B, FPN_C, OUT_H, OUT_W), out.shape
    assert bool(jnp.all(jnp.isfinite(out)))

    ref = fpn_combine_reference(x0, x1, x2, params)
    # Tolerance covers bf16 conv operands (f32 accumulate) vs the f32 reference.
    err = float(jnp.max(jnp.abs(out - ref)))
    assert jnp.allclose(out, ref, rtol=2e-2, atol=3e-2), err
    print("KERNEL_OK")
</pallas_src>

<mosaic_0001>
module attributes {stable_mosaic.version = 11 : i64} {
  func.func @fpn_combine_kernel(%arg0: memref<3xf32, #tpu.memory_space<smem>>, %arg1: memref<40x512xbf16, #tpu.memory_space<vmem>>, %arg2: memref<64x40xbf16, #tpu.memory_space<vmem>>, %arg3: memref<64x1xf32, #tpu.memory_space<vmem>>, %arg4: memref<64x128xf32, #tpu.memory_space<vmem>>, %arg5: memref<112x32xbf16, #tpu.memory_space<vmem>>, %arg6: memref<64x112xbf16, #tpu.memory_space<vmem>>, %arg7: memref<64x1xf32, #tpu.memory_space<vmem>>, %arg8: memref<32x128xbf16, #tpu.memory_space<vmem>>, %arg9: memref<64x128xf32, #tpu.memory_space<vmem>>) attributes {dimension_semantics = [], scalar_prefetch = 0 : i64, scratch_operands = 0 : i64, tpu.core_type = #tpu.core_type<tc>} {
    %c0 = arith.constant 0 : index
    %c0_0 = arith.constant 0 : index
    %0 = vector.load %arg2[%c0, %c0_0] : memref<64x40xbf16, #tpu.memory_space<vmem>>, vector<64x40xbf16>
    %c0_1 = arith.constant 0 : index
    %c0_2 = arith.constant 0 : index
    %1 = vector.load %arg1[%c0_1, %c0_2] : memref<40x512xbf16, #tpu.memory_space<vmem>>, vector<40x512xbf16>
    %cst = arith.constant dense<0.000000e+00> : vector<64x512xf32>
    %2 = tpu.matmul %0, %1, %cst {dimension_numbers = #tpu.dot_dimension_numbers<[1], [0], [0], [1], [0, 0, 1, 1], [], []>} : vector<64x40xbf16>, vector<40x512xbf16>, vector<64x512xf32> -> vector<64x512xf32>
    %c0_3 = arith.constant 0 : index
    %c0_4 = arith.constant 0 : index
    %3 = vector.load %arg3[%c0_3, %c0_4] : memref<64x1xf32, #tpu.memory_space<vmem>>, vector<64x1xf32>
    %4 = vector.broadcast %3 : vector<64x1xf32> to vector<64x512xf32>
    %5 = arith.addf %2, %4 : vector<64x512xf32>
    %6 = vector.extract_strided_slice %5 {offsets = [0, 0], sizes = [64, 128], strides = [1, 1]} : vector<64x512xf32> to vector<64x128xf32>
    %7 = vector.extract_strided_slice %5 {offsets = [0, 128], sizes = [64, 128], strides = [1, 1]} : vector<64x512xf32> to vector<64x128xf32>
    %8 = vector.extract_strided_slice %5 {offsets = [0, 256], sizes = [64, 128], strides = [1, 1]} : vector<64x512xf32> to vector<64x128xf32>
    %9 = vector.extract_strided_slice %5 {offsets = [0, 384], sizes = [64, 128], strides = [1, 1]} : vector<64x512xf32> to vector<64x128xf32>
    %10 = tpu.iota {dimensions = array<i32: 1>} : vector<64x128xi32>
    %c64_i32 = arith.constant 64 : i32
    %c0_i32 = arith.constant 0 : i32
    %11 = arith.cmpi eq, %c64_i32, %c0_i32 : i32
    %c1_i32 = arith.constant 1 : i32
    %12 = arith.select %11, %c1_i32, %c64_i32 : i32
    %13 = vector.broadcast %12 : i32 to vector<64x128xi32>
    %14 = arith.remsi %10, %13 : vector<64x128xi32>
    %c0_i32_5 = arith.constant 0 : i32
    %15 = vector.broadcast %c0_i32_5 : i32 to vector<64x128xi32>
    %16 = arith.cmpi ne, %14, %15 : vector<64x128xi32>
    %c0_i32_6 = arith.constant 0 : i32
    %17 = vector.broadcast %c0_i32_6 : i32 to vector<64x128xi32>
    %18 = arith.cmpi slt, %14, %17 : vector<64x128xi32>
    %c0_i32_7 = arith.constant 0 : i32
    %19 = arith.cmpi slt, %12, %c0_i32_7 : i32
    %20 = vector.broadcast %19 : i1 to vector<64x128xi1>
    %21 = vector.broadcast %20 : vector<64x128xi1> to vector<64x128xi1>
    %22 = arith.xori %18, %21 : vector<64x128xi1>
    %23 = arith.andi %22, %16 : vector<64x128xi1>
    %24 = vector.broadcast %12 : i32 to vector<64x128xi32>
    %25 = arith.addi %14, %24 : vector<64x128xi32>
    %26 = arith.select %23, %25, %14 : vector<64x128xi1>, vector<64x128xi32>
    %c8_i32 = arith.constant 8 : i32
    %27 = vector.broadcast %c8_i32 : i32 to vector<64x128xi32>
    %28 = arith.cmpi sge, %26, %27 : vector<64x128xi32>
    %c8_i32_8 = arith.constant 8 : i32
    %c0_i32_9 = arith.constant 0 : i32
    %29 = arith.cmpi eq, %c8_i32_8, %c0_i32_9 : i32
    %c1_i32_10 = arith.constant 1 : i32
    %30 = arith.select %29, %c1_i32_10, %c8_i32_8 : i32
    %31 = vector.broadcast %30 : i32 to vector<64x128xi32>
    %32 = arith.remsi %10, %31 : vector<64x128xi32>
    %c0_i32_11 = arith.constant 0 : i32
    %33 = vector.broadcast %c0_i32_11 : i32 to vector<64x128xi32>
    %34 = arith.cmpi ne, %32, %33 : vector<64x128xi32>
    %c0_i32_12 = arith.constant 0 : i32
    %35 = vector.broadcast %c0_i32_12 : i32 to vector<64x128xi32>
    %36 = arith.cmpi slt, %32, %35 : vector<64x128xi32>
    %c0_i32_13 = arith.constant 0 : i32
    %37 = arith.cmpi slt, %30, %c0_i32_13 : i32
    %38 = vector.broadcast %37 : i1 to vector<64x128xi1>
    %39 = vector.broadcast %38 : vector<64x128xi1> to vector<64x128xi1>
    %40 = arith.xori %36, %39 : vector<64x128xi1>
    %41 = arith.andi %40, %34 : vector<64x128xi1>
    %42 = vector.broadcast %30 : i32 to vector<64x128xi32>
    %43 = arith.addi %32, %42 : vector<64x128xi32>
    %44 = arith.select %41, %43, %32 : vector<64x128xi1>, vector<64x128xi32>
    %c1_i32_14 = arith.constant 1 : i32
    %45 = vector.broadcast %c1_i32_14 : i32 to vector<64x128xi32>
    %46 = arith.cmpi sge, %44, %45 : vector<64x128xi32>
    %47 = arith.maximumf %6, %7 : vector<64x128xf32>
    %48 = arith.maximumf %8, %9 : vector<64x128xf32>
    %49 = arith.maximumf %47, %48 : vector<64x128xf32>
    %50 = arith.maximumf %8, %9 : vector<64x128xf32>
    %c8_i32_15 = arith.constant 8 : i32
    %51 = tpu.dynamic_rotate %50 by %c8_i32_15 dim 1 : vector<64x128xf32>, i32 -> vector<64x128xf32>
    %52 = arith.maximumf %7, %9 : vector<64x128xf32>
    %c1_i32_16 = arith.constant 1 : i32
    %53 = tpu.dynamic_rotate %52 by %c1_i32_16 dim 1 : vector<64x128xf32>, i32 -> vector<64x128xf32>
    %c9_i32 = arith.constant 9 : i32
    %54 = tpu.dynamic_rotate %9 by %c9_i32 dim 1 : vector<64x128xf32>, i32 -> vector<64x128xf32>
    %55 = arith.select %28, %51, %49 : vector<64x128xi1>, vector<64x128xf32>
    %56 = arith.maximumf %49, %55 : vector<64x128xf32>
    %57 = arith.select %46, %53, %56 : vector<64x128xi1>, vector<64x128xf32>
    %58 = arith.maximumf %56, %57 : vector<64x128xf32>
    %59 = arith.andi %28, %46 : vector<64x128xi1>
    %60 = arith.select %59, %54, %58 : vector<64x128xi1>, vector<64x128xf32>
    %61 = arith.maximumf %58, %60 : vector<64x128xf32>
    %c1 = arith.constant 1 : index
    %62 = memref.load %arg0[%c1] : memref<3xf32, #tpu.memory_space<smem>>
    %c0_17 = arith.constant 0 : index
    %c0_18 = arith.constant 0 : index
    %63 = vector.load %arg4[%c0_17, %c0_18] : memref<64x128xf32, #tpu.memory_space<vmem>>, vector<64x128xf32>
    %64 = vector.broadcast %62 : f32 to vector<64x128xf32>
    %65 = arith.mulf %64, %63 : vector<64x128xf32>
    %c0_19 = arith.constant 0 : index
    %c0_20 = arith.constant 0 : index
    %66 = vector.load %arg6[%c0_19, %c0_20] : memref<64x112xbf16, #tpu.memory_space<vmem>>, vector<64x112xbf16>
    %c0_21 = arith.constant 0 : index
    %c0_22 = arith.constant 0 : index
    %67 = vector.load %arg5[%c0_21, %c0_22] : memref<112x32xbf16, #tpu.memory_space<vmem>>, vector<112x32xbf16>
    %cst_23 = arith.constant dense<0.000000e+00> : vector<64x32xf32>
    %68 = tpu.matmul %66, %67, %cst_23 {dimension_numbers = #tpu.dot_dimension_numbers<[1], [0], [0], [1], [0, 0, 1, 1], [], []>} : vector<64x112xbf16>, vector<112x32xbf16>, vector<64x32xf32> -> vector<64x32xf32>
    %c0_24 = arith.constant 0 : index
    %c0_25 = arith.constant 0 : index
    %69 = vector.load %arg7[%c0_24, %c0_25] : memref<64x1xf32, #tpu.memory_space<vmem>>, vector<64x1xf32>
    %70 = vector.broadcast %69 : vector<64x1xf32> to vector<64x32xf32>
    %71 = arith.addf %68, %70 : vector<64x32xf32>
    %c0_26 = arith.constant 0 : index
    %c0_27 = arith.constant 0 : index
    %72 = vector.load %arg8[%c0_26, %c0_27] : memref<32x128xbf16, #tpu.memory_space<vmem>>, vector<32x128xbf16>
    %73 = arith.extf %72 : vector<32x128xbf16> to vector<32x128xf32>
    %cst_28 = arith.constant dense<0.000000e+00> : vector<64x128xf32>
    %74 = tpu.matmul %71, %73, %cst_28 {dimension_numbers = #tpu.dot_dimension_numbers<[1], [0], [0], [1], [0, 0, 1, 1], [], []>} : vector<64x32xf32>, vector<32x128xf32>, vector<64x128xf32> -> vector<64x128xf32>
    %75 = arith.addf %61, %65 : vector<64x128xf32>
    %76 = arith.addf %75, %74 : vector<64x128xf32>
    %c0_29 = arith.constant 0 : index
    %c0_30 = arith.constant 0 : index
    %77 = vector.load %arg9[%c0_29, %c0_30] : memref<64x128xf32, #tpu.memory_space<vmem>>, vector<64x128xf32>
    tpu.vector_store %arg9[%c0_29, %c0_30], %76 {strides = array<i32>} : memref<64x128xf32, #tpu.memory_space<vmem>>, vector<64x128xf32>,
    return
  }
}

</mosaic_0001>

<llo_original>
// kernel: _lambda_.1
$region0: #{_lambda_.1}
  #allocation0 [shape = 'u32[]', space=smem, size = 0x4, offset = 0x4, fixed_abs, tag = 'smem constant byte address 0x4 - core index']
  #allocation1 [shape = 'u32[144,128]{1,0:T(1,128)}', space=vmem, size = 0x12000, scoped, tag = 'internal scratch']
  %s0 = inlined_call_operand.vmem [shape: f32[3], index: 0, kind: input, shape index: {}]
  %s1 = inlined_call_operand.vmem [shape: bf16[40,512], index: 1, kind: input, shape index: {}]
  %s2 = inlined_call_operand.vmem [shape: bf16[64,40], index: 2, kind: input, shape index: {}]
  %s3 = inlined_call_operand.vmem [shape: f32[64,1], index: 3, kind: input, shape index: {}]
  %s4 = inlined_call_operand.vmem [shape: f32[64,128], index: 4, kind: input, shape index: {}]
  %s5 = inlined_call_operand.vmem [shape: bf16[112,32], index: 5, kind: input, shape index: {}]
  %s6 = inlined_call_operand.vmem [shape: bf16[64,112], index: 6, kind: input, shape index: {}]
  %s7 = inlined_call_operand.vmem [shape: f32[64,1], index: 7, kind: input, shape index: {}]
  %s8 = inlined_call_operand.vmem [shape: bf16[32,128], index: 8, kind: input, shape index: {}]
  %s9 = inlined_call_operand.vmem [shape: f32[64,128], index: 9, kind: output, shape index: {}]
  %s10 = sld [smem:[#allocation0]]
  $region50: #{_lambda_.1} parent=0
    _
  %s12 = ssub.s32 1, %s10
  %s13 = scalar_select 0, %s12, %s10
  $region1: #{_lambda_.1} parent=0
    #allocation2 [shape = 'u8[512]{0}', space=smem, size = 0x200, scoped, tag = 'input window, operand 0, single buffered']
    #allocation3 [shape = 's32[1]{0}', space=sflag, size = 0x4, scoped, tag = 'scoped memory for _lambda_.1']
    %14 = vsyncpa [#allocation3], 0
    // Predicated region
    $region2: #{_lambda_.1} parent=1 // pred_check
      _
    $region3: #{_lambda_.1} parent=1 // pred_check_branch
      %16 = sbr.rel (0) target = $region5
    $region4: #{_lambda_.1} parent=1 // pred_region
      %s18 = ssub.s32 16, 16
      %19 = vsyncadd [#allocation3], %s18
      %s21 = sshll.u32 %s0, 4
      %s22 = int_to_ptr.vmem [resolvable:$true] %s21
      %24 = dma.vmem_to_smem %s22, 16, [#allocation2], [#allocation3]
    $region5: #{_lambda_.1} parent=1 // pred_fallthru
      _
    // Predicated region
    $region6: #{_lambda_.1} parent=1 // pred_check
      _
    $region7: #{_lambda_.1} parent=1 // pred_check_branch
      %26 = sbr.rel (0) target = $region9
    $region8: #{_lambda_.1} parent=1 // pred_region
      _
    $region9: #{_lambda_.1} parent=1 // pred_fallthru
      _
    // Predicated region
    $region10: #{_lambda_.1} parent=1 // pred_check
      _
    $region11: #{_lambda_.1} parent=1 // pred_check_branch
      %28 = sbr.rel (0) target = $region13
    $region12: #{_lambda_.1} parent=1 // pred_region
      _
    $region13: #{_lambda_.1} parent=1 // pred_fallthru
      _
    // Predicated region
    $region14: #{_lambda_.1} parent=1 // pred_check
      _
    $region15: #{_lambda_.1} parent=1 // pred_check_branch
      %30 = sbr.rel (0) target = $region17
    $region16: #{_lambda_.1} parent=1 // pred_region
      _
    $region17: #{_lambda_.1} parent=1 // pred_fallthru
      _
    // Predicated region
    $region18: #{_lambda_.1} parent=1 // pred_check
      _
    $region19: #{_lambda_.1} parent=1 // pred_check_branch
      %32 = sbr.rel (0) target = $region21
    $region20: #{_lambda_.1} parent=1 // pred_region
      _
    $region21: #{_lambda_.1} parent=1 // pred_fallthru
      _
    // Predicated region
    $region22: #{_lambda_.1} parent=1 // pred_check
      _
    $region23: #{_lambda_.1} parent=1 // pred_check_branch
      %34 = sbr.rel (0) target = $region25
    $region24: #{_lambda_.1} parent=1 // pred_region
      _
    $region25: #{_lambda_.1} parent=1 // pred_fallthru
      _
    // Predicated region
    $region26: #{_lambda_.1} parent=1 // pred_check
      _
    $region27: #{_lambda_.1} parent=1 // pred_check_branch
      %36 = sbr.rel (0) target = $region29
    $region28: #{_lambda_.1} parent=1 // pred_region
      _
    $region29: #{_lambda_.1} parent=1 // pred_fallthru
      _
    // Predicated region
    $region30: #{_lambda_.1} parent=1 // pred_check
      _
    $region31: #{_lambda_.1} parent=1 // pred_check_branch
      %38 = sbr.rel (0) target = $region33
    $region32: #{_lambda_.1} parent=1 // pred_region
      _
    $region33: #{_lambda_.1} parent=1 // pred_fallthru
      _
    // Predicated region
    $region34: #{_lambda_.1} parent=1 // pred_check
      _
    $region35: #{_lambda_.1} parent=1 // pred_check_branch
      %40 = sbr.rel (0) target = $region37
    $region36: #{_lambda_.1} parent=1 // pred_region
      _
    $region37: #{_lambda_.1} parent=1 // pred_fallthru
      _
    // Predicated region
    $region38: #{_lambda_.1} parent=1 // pred_check
      _
    $region39: #{_lambda_.1} parent=1 // pred_check_branch
      %42 = sbr.rel (0) target = $region41
    $region40: #{_lambda_.1} parent=1 // pred_region
      %43 = dma.done [#allocation3], 16
    $region41: #{_lambda_.1} parent=1 // pred_fallthru
      _
    %44 = sfence
    %v46 = vld [vmem:[%s2] sm:$0xf]
    %v47 = vld [vmem:[%s2 + $0x4] sm:$0xf]
    %v48 = vld [vmem:[%s2 + $0x8] sm:$0xf]
    %v49 = vld [vmem:[%s2 + $0xc] sm:$0xf]
    %v50 = vld [vmem:[%s2 + $0x10] sm:$0xf]
    %v51 = vld [vmem:[%s2 + $0x14] sm:$0xf]
    %v52 = vld [vmem:[%s2 + $0x18] sm:$0xf]
    %v53 = vld [vmem:[%s2 + $0x1c] sm:$0xf]
    %v54 = vld [vmem:[%s1] sm:$0xff]
    %v55 = vld [vmem:[%s1 + $0x8] sm:$0xff]
    %v56 = vld [vmem:[%s1 + $0x10] sm:$0xff]
    %v57 = vld [vmem:[%s1 + $0x18] sm:$0xff]
    %v58 = vld [vmem:[%s1 + $0x20] sm:$0xff]
    %v59 = vld [vmem:[%s1 + $0x28] sm:$0xff]
    %v60 = vld [vmem:[%s1 + $0x30] sm:$0xff]
    %v61 = vld [vmem:[%s1 + $0x38] sm:$0xff]
    %v62 = vld [vmem:[%s1 + $0x40] sm:$0xff]
    %v63 = vld [vmem:[%s1 + $0x48] sm:$0xff]
    %v64 = vld [vmem:[%s3] sm:$0xff]
    %v65 = vld [vmem:[%s3 + $0x8] sm:$0xff]
    %v66 = vld [vmem:[%s3 + $0x10] sm:$0xff]
    %v67 = vld [vmem:[%s3 + $0x18] sm:$0xff]
    %v68 = vld [vmem:[%s3 + $0x20] sm:$0xff]
    %v69 = vld [vmem:[%s3 + $0x28] sm:$0xff]
    %v70 = vld [vmem:[%s3 + $0x30] sm:$0xff]
    %v71 = vld [vmem:[%s3 + $0x38] sm:$0xff]
    %73 = vset.pattern.permute.xlu0 0
    %74 = vperm.xlu0 %73, %v64
    %v75 = vpop.permute.xlu0 %74
    %78 = vset.pattern.permute.xlu0 0
    %79 = vperm.xlu0 %78, %v65
    %v80 = vpop.permute.xlu0 %79
    %83 = vset.pattern.permute.xlu0 0
    %84 = vperm.xlu0 %83, %v66
    %v85 = vpop.permute.xlu0 %84
    %88 = vset.pattern.permute.xlu0 0
    %89 = vperm.xlu0 %88, %v67
    %v90 = vpop.permute.xlu0 %89
    %93 = vset.pattern.permute.xlu0 0
    %94 = vperm.xlu0 %93, %v68
    %v95 = vpop.permute.xlu0 %94
    %98 = vset.pattern.permute.xlu0 0
    %99 = vperm.xlu0 %98, %v69
    %v100 = vpop.permute.xlu0 %99
    %103 = vset.pattern.permute.xlu0 0
    %104 = vperm.xlu0 %103, %v70
    %v105 = vpop.permute.xlu0 %104
    %108 = vset.pattern.permute.xlu0 0
    %109 = vperm.xlu0 %108, %v71
    %v110 = vpop.permute.xlu0 %109
    %v120 = vunpack.c.l.b16 %v46
    %v121 = vunpack.c.l.b16 %v47
    %v122 = vunpack.c.l.b16 %v48
    %v123 = vunpack.c.l.b16 %v49
    %v124 = vunpack.c.l.b16 %v50
    %v125 = vunpack.c.l.b16 %v51
    %v126 = vunpack.c.l.b16 %v52
    %v127 = vunpack.c.l.b16 %v53
    %v128 = vpack.c.b16 %v121, %v120
    %v129 = vpack.c.b16 %v123, %v122
    %v130 = vpack.c.b16 %v125, %v124
    %v131 = vpack.c.b16 %v127, %v126
    %v142 = vunpack.c.l.b16 %v54
    %v143 = vunpack.c.h.b16 %v54
    %v144 = vunpack.c.l.b16 %v55
    %v145 = vunpack.c.h.b16 %v55
    %v146 = vunpack.c.l.b16 %v56
    %v147 = vunpack.c.h.b16 %v56
    %v148 = vunpack.c.l.b16 %v57
    %v149 = vunpack.c.h.b16 %v57
    %v150 = vunpack.c.l.b16 %v58
    %v151 = vunpack.c.h.b16 %v58
    %v152 = vunpack.c.l.b16 %v59
    %v153 = vunpack.c.h.b16 %v59
    %v154 = vunpack.c.l.b16 %v60
    %v155 = vunpack.c.h.b16 %v60
    %v156 = vunpack.c.l.b16 %v61
    %v157 = vunpack.c.h.b16 %v61
    %v158 = vunpack.c.l.b16 %v62
    %v159 = vunpack.c.h.b16 %v62
    %v160 = vunpack.c.l.b16 %v63
    %v161 = vunpack.c.h.b16 %v63
    %v162 = vpack.c.b16 %v146, %v142
    %v163 = vpack.c.b16 %v147, %v143
    %v164 = vpack.c.b16 %v148, %v144
    %v165 = vpack.c.b16 %v149, %v145
    %v166 = vpack.c.b16 %v154, %v150
    %v167 = vpack.c.b16 %v155, %v151
    %v168 = vpack.c.b16 %v156, %v152
    %v169 = vpack.c.b16 %v157, %v153
    %v170 = vpack.c.b16 %v158, %v158
    %v171 = vpack.c.b16 %v159, %v159
    %v172 = vpack.c.b16 %v160, %v160
    %v173 = vpack.c.b16 %v161, %v161
    %vm182 = vcmask 326656
    %v184 = vsel %vm182, %v128, 0
    %v187 = vsel %vm182, %v129, 0
    %v190 = vsel %vm182, %v130, 0
    %v193 = vsel %vm182, %v131, 0
    %vm195 = vcmask 1043456
    %v197 = vsel %vm195, %v170, 0
    %v200 = vsel %vm195, %v171, 0
    %v203 = vsel %vm195, %v172, 0
    %v206 = vsel %vm195, %v173, 0
    %208 = vmatprep.subr.bf16.mxu0 0
    %209 = vmatpush1.bf16.msra.mxu0 0
    %210 = vmatprep.subr.bf16.mxu0 0
    %211 = vmatpush1.bf16.msra.mxu0 0
    %212 = vmatprep.subr.bf16.mxu0 0
    %213 = vmatpush1.bf16.msra.mxu0 0
    %214 = vmatprep.subr.bf16.mxu0 0
    %215 = vmatpush1.bf16.msra.mxu0 0
    %216 = vmatprep.subr.bf16.mxu0 0
    %217 = vmatpush1.bf16.msra.mxu0 0
    %218 = vmatprep.subr.bf16.mxu0 %v200
    %219 = vmatpush1.bf16.msra.mxu0 %v197
    %220 = vmatprep.subr.bf16.mxu0 %v167
    %221 = vmatpush1.bf16.msra.mxu0 %v166
    %222 = vmatprep.subr.bf16.mxu0 %v163
    %223 = vmatpush1.bf16.msra.mxu0 %v162
    %224 = vmatprep.subr.bf16.mxu0 0
    %225 = vmatpush2.bf16.msra.mxu0 0
    %226 = vmatprep.subr.bf16.mxu0 0
    %227 = vmatpush2.bf16.msra.mxu0 0
    %228 = vmatprep.subr.bf16.mxu0 0
    %229 = vmatpush2.bf16.msra.mxu0 0
    %230 = vmatprep.subr.bf16.mxu0 0
    %231 = vmatpush2.bf16.msra.mxu0 0
    %232 = vmatprep.subr.bf16.mxu0 0
    %233 = vmatpush2.bf16.msra.mxu0 0
    %234 = vmatprep.subr.bf16.mxu0 0
    %235 = vmatpush2.bf16.msra.mxu0 0
    %236 = vmatprep.subr.bf16.mxu0 0
    %237 = vmatpush2.bf16.msra.mxu0 0
    %238 = vmatprep.subr.bf16.mxu0 0
    %239 = vmatpush2.bf16.msra.mxu0 0
    %240 = vmatprep.mubr.bf16.mxu0 0
    %241 = vmatmul.mubr.bf16.gmra.mxu0 %v184
    %v242 = vpop.f32.mrf.mxu0
    %v243 = vadd.f32 %v75, %v242
    %v244 = vpop.f32.mrf.mxu0
    %v245 = vadd.f32 %v75, %v244
    %v246 = vpop.f32.mrf.mxu0
    %v247 = vadd.f32 %v80, %v246
    %v248 = vpop.f32.mrf.mxu0
    %v249 = vadd.f32 %v80, %v248
    %250 = vmatprep.mubr.bf16.mxu0 0
    %251 = vmatmul.mubr.bf16.gmra.mxu0 %v187
    %v252 = vpop.f32.mrf.mxu0
    %v253 = vadd.f32 %v85, %v252
    %v254 = vpop.f32.mrf.mxu0
    %v255 = vadd.f32 %v85, %v254
    %v256 = vpop.f32.mrf.mxu0
    %v257 = vadd.f32 %v90, %v256
    %v258 = vpop.f32.mrf.mxu0
    %v259 = vadd.f32 %v90, %v258
    %260 = vmatprep.mubr.bf16.mxu0 0
    %261 = vmatmul.mubr.bf16.gmra.mxu0 %v190
    %v262 = vpop.f32.mrf.mxu0
    %v263 = vadd.f32 %v95, %v262
    %v264 = vpop.f32.mrf.mxu0
    %v265 = vadd.f32 %v95, %v264
    %v266 = vpop.f32.mrf.mxu0
    %v267 = vadd.f32 %v100, %v266
    %v268 = vpop.f32.mrf.mxu0
    %v269 = vadd.f32 %v100, %v268
    %270 = vmatprep.mubr.bf16.mxu0 0
    %271 = vmatmul.mubr.bf16.gmra.mxu0 %v193
    %v272 = vpop.f32.mrf.mxu0
    %v273 = vadd.f32 %v105, %v272
    %v274 = vpop.f32.mrf.mxu0
    %v275 = vadd.f32 %v105, %v274
    %v276 = vpop.f32.mrf.mxu0
    %v277 = vadd.f32 %v110, %v276
    %v278 = vpop.f32.mrf.mxu0
    %v279 = vadd.f32 %v110, %v278
    %280 = vdwg.mxu0
    %281 = vmatprep.subr.bf16.mxu0 0
    %282 = vmatpush1.bf16.msra.mxu0 0
    %283 = vmatprep.subr.bf16.mxu0 0
    %284 = vmatpush1.bf16.msra.mxu0 0
    %285 = vmatprep.subr.bf16.mxu0 0
    %286 = vmatpush1.bf16.msra.mxu0 0
    %287 = vmatprep.subr.bf16.mxu0 0
    %288 = vmatpush1.bf16.msra.mxu0 0
    %289 = vmatprep.subr.bf16.mxu0 0
    %290 = vmatpush1.bf16.msra.mxu0 0
    %291 = vmatprep.subr.bf16.mxu0 %v206
    %292 = vmatpush1.bf16.msra.mxu0 %v203
    %293 = vmatprep.subr.bf16.mxu0 %v169
    %294 = vmatpush1.bf16.msra.mxu0 %v168
    %295 = vmatprep.subr.bf16.mxu0 %v165
    %296 = vmatpush1.bf16.msra.mxu0 %v164
    %297 = vmatprep.subr.bf16.mxu0 0
    %298 = vmatpush2.bf16.msra.mxu0 0
    %299 = vmatprep.subr.bf16.mxu0 0
    %300 = vmatpush2.bf16.msra.mxu0 0
    %301 = vmatprep.subr.bf16.mxu0 0
    %302 = vmatpush2.bf16.msra.mxu0 0
    %303 = vmatprep.subr.bf16.mxu0 0
    %304 = vmatpush2.bf16.msra.mxu0 0
    %305 = vmatprep.subr.bf16.mxu0 0
    %306 = vmatpush2.bf16.msra.mxu0 0
    %307 = vmatprep.subr.bf16.mxu0 0
    %308 = vmatpush2.bf16.msra.mxu0 0
    %309 = vmatprep.subr.bf16.mxu0 0
    %310 = vmatpush2.bf16.msra.mxu0 0
    %311 = vmatprep.subr.bf16.mxu0 0
    %312 = vmatpush2.bf16.msra.mxu0 0
    %313 = vmatprep.mubr.bf16.mxu0 0
    %314 = vmatmul.mubr.bf16.gmra.mxu0 %v184
    %v315 = vpop.f32.mrf.mxu0
    %v316 = vadd.f32 %v75, %v315
    %v317 = vpop.f32.mrf.mxu0
    %v318 = vadd.f32 %v75, %v317
    %v319 = vpop.f32.mrf.mxu0
    %v320 = vadd.f32 %v80, %v319
    %v321 = vpop.f32.mrf.mxu0
    %v322 = vadd.f32 %v80, %v321
    %323 = vmatprep.mubr.bf16.mxu0 0
    %324 = vmatmul.mubr.bf16.gmra.mxu0 %v187
    %v325 = vpop.f32.mrf.mxu0
    %v326 = vadd.f32 %v85, %v325
    %v327 = vpop.f32.mrf.mxu0
    %v328 = vadd.f32 %v85, %v327
    %v329 = vpop.f32.mrf.mxu0
    %v330 = vadd.f32 %v90, %v329
    %v331 = vpop.f32.mrf.mxu0
    %v332 = vadd.f32 %v90, %v331
    %333 = vmatprep.mubr.bf16.mxu0 0
    %334 = vmatmul.mubr.bf16.gmra.mxu0 %v190
    %v335 = vpop.f32.mrf.mxu0
    %v336 = vadd.f32 %v95, %v335
    %v337 = vpop.f32.mrf.mxu0
    %v338 = vadd.f32 %v95, %v337
    %v339 = vpop.f32.mrf.mxu0
    %v340 = vadd.f32 %v100, %v339
    %v341 = vpop.f32.mrf.mxu0
    %v342 = vadd.f32 %v100, %v341
    %343 = vmatprep.mubr.bf16.mxu0 0
    %344 = vmatmul.mubr.bf16.gmra.mxu0 %v193
    %v345 = vpop.f32.mrf.mxu0
    %v346 = vadd.f32 %v105, %v345
    %v347 = vpop.f32.mrf.mxu0
    %v348 = vadd.f32 %v105, %v347
    %v349 = vpop.f32.mrf.mxu0
    %v350 = vadd.f32 %v110, %v349
    %v351 = vpop.f32.mrf.mxu0
    %v352 = vadd.f32 %v110, %v351
    %353 = vdwg.mxu0
    %v354 = vlaneseq
    %v355 = vand.u32 %v354, 127
    %vm356 = vcmp.lt.s32.totalorder %v355, 0
    %v357 = vsub.s32 0, %v355
    %v358 = vsel %vm356, %v357, %v355
    %v359 = vshrl.u32 %v358, 6
    %v360 = vand.u32 %v358, 63
    %v361 = vsub.s32 0, %v360
    %v362 = vsel %vm356, %v361, %v360
    %vm363 = vcmp.ne.s32.totalorder %v362, 0
    %vm364 = vcmp.lt.s32.totalorder %v362, 0
    %vm365 = vmand %vm364, %vm363
    %v366 = vadd.s32 %v362, 64
    %v367 = vsel %vm365, %v366, %v362
    %vm368 = vcmp.ge.s32.totalorder %v367, 8
    %vm369 = vcmp.lt.s32.totalorder %v355, 0
    %v370 = vsub.s32 0, %v355
    %v371 = vsel %vm369, %v370, %v355
    %v372 = vshrl.u32 %v371, 3
    %v373 = vand.u32 %v371, 7
    %v374 = vsub.s32 0, %v373
    %v375 = vsel %vm369, %v374, %v373
    %vm376 = vcmp.ne.s32.totalorder %v375, 0
    %vm377 = vcmp.lt.s32.totalorder %v375, 0
    %vm378 = vmand %vm377, %vm376
    %v379 = vadd.s32 %v375, 8
    %v380 = vsel %vm378, %v379, %v375
    %vm381 = vcmp.ge.s32.totalorder %v380, 1
    %v382 = vmax.f32 %v243, %v245
    %v383 = vmax.f32 %v247, %v249
    %v384 = vmax.f32 %v253, %v255
    %v385 = vmax.f32 %v257, %v259
    %v386 = vmax.f32 %v263, %v265
    %v387 = vmax.f32 %v267, %v269
    %v388 = vmax.f32 %v273, %v275
    %v389 = vmax.f32 %v277, %v279
    %v390 = vmax.f32 %v316, %v318
    %v391 = vmax.f32 %v320, %v322
    %v392 = vmax.f32 %v326, %v328
    %v393 = vmax.f32 %v330, %v332
    %v394 = vmax.f32 %v336, %v338
    %v395 = vmax.f32 %v340, %v342
    %v396 = vmax.f32 %v346, %v348
    %v397 = vmax.f32 %v350, %v352
    %v398 = vmax.f32 %v382, %v390
    %v399 = vmax.f32 %v383, %v391
    %v400 = vmax.f32 %v384, %v392
    %v401 = vmax.f32 %v385, %v393
    %v402 = vmax.f32 %v386, %v394
    %v403 = vmax.f32 %v387, %v395
    %v404 = vmax.f32 %v388, %v396
    %v405 = vmax.f32 %v389, %v397
    %406 = vrot.lane.b32.xlu0 %v390, 8
    %v407 = vpop.permute.xlu0 %406
    %408 = vrot.lane.b32.xlu0 %v391, 8
    %v409 = vpop.permute.xlu0 %408
    %410 = vrot.lane.b32.xlu0 %v392, 8
    %v411 = vpop.permute.xlu0 %410
    %412 = vrot.lane.b32.xlu0 %v393, 8
    %v413 = vpop.permute.xlu0 %412
    %414 = vrot.lane.b32.xlu0 %v394, 8
    %v415 = vpop.permute.xlu0 %414
    %416 = vrot.lane.b32.xlu0 %v395, 8
    %v417 = vpop.permute.xlu0 %416
    %418 = vrot.lane.b32.xlu0 %v396, 8
    %v419 = vpop.permute.xlu0 %418
    %420 = vrot.lane.b32.xlu0 %v397, 8
    %v421 = vpop.permute.xlu0 %420
    %v422 = vmax.f32 %v245, %v318
    %v423 = vmax.f32 %v249, %v322
    %v424 = vmax.f32 %v255, %v328
    %v425 = vmax.f32 %v259, %v332
    %v426 = vmax.f32 %v265, %v338
    %v427 = vmax.f32 %v269, %v342
    %v428 = vmax.f32 %v275, %v348
    %v429 = vmax.f32 %v279, %v352
    %430 = vrot.lane.b32.xlu0 %v422, 1
    %v431 = vpop.permute.xlu0 %430
    %432 = vrot.lane.b32.xlu0 %v423, 1
    %v433 = vpop.permute.xlu0 %432
    %434 = vrot.lane.b32.xlu0 %v424, 1
    %v435 = vpop.permute.xlu0 %434
    %436 = vrot.lane.b32.xlu0 %v425, 1
    %v437 = vpop.permute.xlu0 %436
    %438 = vrot.lane.b32.xlu0 %v426, 1
    %v439 = vpop.permute.xlu0 %438
    %440 = vrot.lane.b32.xlu0 %v427, 1
    %v441 = vpop.permute.xlu0 %440
    %442 = vrot.lane.b32.xlu0 %v428, 1
    %v443 = vpop.permute.xlu0 %442
    %444 = vrot.lane.b32.xlu0 %v429, 1
    %v445 = vpop.permute.xlu0 %444
    %446 = vrot.lane.b32.xlu0 %v318, 9
    %v447 = vpop.permute.xlu0 %446
    %448 = vrot.lane.b32.xlu0 %v322, 9
    %v449 = vpop.permute.xlu0 %448
    %450 = vrot.lane.b32.xlu0 %v328, 9
    %v451 = vpop.permute.xlu0 %450
    %452 = vrot.lane.b32.xlu0 %v332, 9
    %v453 = vpop.permute.xlu0 %452
    %454 = vrot.lane.b32.xlu0 %v338, 9
    %v455 = vpop.permute.xlu0 %454
    %456 = vrot.lane.b32.xlu0 %v342, 9
    %v457 = vpop.permute.xlu0 %456
    %458 = vrot.lane.b32.xlu0 %v348, 9
    %v459 = vpop.permute.xlu0 %458
    %460 = vrot.lane.b32.xlu0 %v352, 9
    %v461 = vpop.permute.xlu0 %460
    %v462 = vsel %vm368, %v407, %v398
    %v463 = vsel %vm368, %v409, %v399
    %v464 = vsel %vm368, %v411, %v400
    %v465 = vsel %vm368, %v413, %v401
    %v466 = vsel %vm368, %v415, %v402
    %v467 = vsel %vm368, %v417, %v403
    %v468 = vsel %vm368, %v419, %v404
    %v469 = vsel %vm368, %v421, %v405
    %v470 = vmax.f32 %v398, %v462
    %v471 = vmax.f32 %v399, %v463
    %v472 = vmax.f32 %v400, %v464
    %v473 = vmax.f32 %v401, %v465
    %v474 = vmax.f32 %v402, %v466
    %v475 = vmax.f32 %v403, %v467
    %v476 = vmax.f32 %v404, %v468
    %v477 = vmax.f32 %v405, %v469
    %v478 = vsel %vm381, %v431, %v470
    %v479 = vsel %vm381, %v433, %v471
    %v480 = vsel %vm381, %v435, %v472
    %v481 = vsel %vm381, %v437, %v473
    %v482 = vsel %vm381, %v439, %v474
    %v483 = vsel %vm381, %v441, %v475
    %v484 = vsel %vm381, %v443, %v476
    %v485 = vsel %vm381, %v445, %v477
    %v486 = vmax.f32 %v470, %v478
    %v487 = vmax.f32 %v471, %v479
    %v488 = vmax.f32 %v472, %v480
    %v489 = vmax.f32 %v473, %v481
    %v490 = vmax.f32 %v474, %v482
    %v491 = vmax.f32 %v475, %v483
    %v492 = vmax.f32 %v476, %v484
    %v493 = vmax.f32 %v477, %v485
    %vm494 = vmand %vm368, %vm381
    %v495 = vsel %vm494, %v447, %v486
    %v496 = vsel %vm494, %v449, %v487
    %v497 = vsel %vm494, %v451, %v488
    %v498 = vsel %vm494, %v453, %v489
    %v499 = vsel %vm494, %v455, %v490
    %v500 = vsel %vm494, %v457, %v491
    %v501 = vsel %vm494, %v459, %v492
    %v502 = vsel %vm494, %v461, %v493
    %v503 = vmax.f32 %v486, %v495
    %v504 = vmax.f32 %v487, %v496
    %v505 = vmax.f32 %v488, %v497
    %v506 = vmax.f32 %v489, %v498
    %v507 = vmax.f32 %v490, %v499
    %v508 = vmax.f32 %v491, %v500
    %v509 = vmax.f32 %v492, %v501
    %v510 = vmax.f32 %v493, %v502
    %s511 = sld [smem:[#allocation2 + $0x1]]
    %v512 = vld [vmem:[%s4] sm:$0xff]
    %v513 = vld [vmem:[%s4 + $0x8] sm:$0xff]
    %v514 = vld [vmem:[%s4 + $0x10] sm:$0xff]
    %v515 = vld [vmem:[%s4 + $0x18] sm:$0xff]
    %v516 = vld [vmem:[%s4 + $0x20] sm:$0xff]
    %v517 = vld [vmem:[%s4 + $0x28] sm:$0xff]
    %v518 = vld [vmem:[%s4 + $0x30] sm:$0xff]
    %v519 = vld [vmem:[%s4 + $0x38] sm:$0xff]
    %v520 = vstv %s511
    %v521 = vmul.f32 %v520, %v512
    %v522 = vmul.f32 %v520, %v513
    %v523 = vmul.f32 %v520, %v514
    %v524 = vmul.f32 %v520, %v515
    %v525 = vmul.f32 %v520, %v516
    %v526 = vmul.f32 %v520, %v517
    %v527 = vmul.f32 %v520, %v518
    %v528 = vmul.f32 %v520, %v519
    %v529 = vld [vmem:[%s6] sm:$0xf]
    %v530 = vld [vmem:[%s6 + $0x4] sm:$0xf]
    %v531 = vld [vmem:[%s6 + $0x8] sm:$0xf]
    %v532 = vld [vmem:[%s6 + $0xc] sm:$0xf]
    %v533 = vld [vmem:[%s6 + $0x10] sm:$0xf]
    %v534 = vld [vmem:[%s6 + $0x14] sm:$0xf]
    %v535 = vld [vmem:[%s6 + $0x18] sm:$0xf]
    %v536 = vld [vmem:[%s6 + $0x1c] sm:$0xf]
    %v537 = vld [vmem:[%s5] sm:$0xf]
    %v538 = vld [vmem:[%s5 + $0x4] sm:$0xf]
    %v539 = vld [vmem:[%s5 + $0x8] sm:$0xf]
    %v540 = vld [vmem:[%s5 + $0xc] sm:$0xf]
    %v541 = vld [vmem:[%s5 + $0x10] sm:$0xf]
    %v542 = vld [vmem:[%s5 + $0x14] sm:$0xf]
    %v543 = vld [vmem:[%s5 + $0x18] sm:$0xf]
    %v544 = vld [vmem:[%s5 + $0x1c] sm:$0xf]
    %v545 = vld [vmem:[%s5 + $0x20] sm:$0xf]
    %v546 = vld [vmem:[%s5 + $0x24] sm:$0xf]
    %v547 = vld [vmem:[%s5 + $0x28] sm:$0xf]
    %v548 = vld [vmem:[%s5 + $0x2c] sm:$0xf]
    %v549 = vld [vmem:[%s5 + $0x30] sm:$0xf]
    %v550 = vld [vmem:[%s5 + $0x34] sm:$0xf]
    %v551 = vld [vmem:[%s7] sm:$0xff]
    %v552 = vld [vmem:[%s7 + $0x8] sm:$0xff]
    %v553 = vld [vmem:[%s7 + $0x10] sm:$0xff]
    %v554 = vld [vmem:[%s7 + $0x18] sm:$0xff]
    %v555 = vld [vmem:[%s7 + $0x20] sm:$0xff]
    %v556 = vld [vmem:[%s7 + $0x28] sm:$0xff]
    %v557 = vld [vmem:[%s7 + $0x30] sm:$0xff]
    %v558 = vld [vmem:[%s7 + $0x38] sm:$0xff]
    %560 = vset.pattern.permute.xlu0 0
    %561 = vperm.xlu0 %560, %v551
    %v562 = vpop.permute.xlu0 %561
    %565 = vset.pattern.permute.xlu0 0
    %566 = vperm.xlu0 %565, %v552
    %v567 = vpop.permute.xlu0 %566
    %570 = vset.pattern.permute.xlu0 0
    %571 = vperm.xlu0 %570, %v553
    %v572 = vpop.permute.xlu0 %571
    %575 = vset.pattern.permute.xlu0 0
    %576 = vperm.xlu0 %575, %v554
    %v577 = vpop.permute.xlu0 %576
    %580 = vset.pattern.permute.xlu0 0
    %581 = vperm.xlu0 %580, %v555
    %v582 = vpop.permute.xlu0 %581
    %585 = vset.pattern.permute.xlu0 0
    %586 = vperm.xlu0 %585, %v556
    %v587 = vpop.permute.xlu0 %586
    %590 = vset.pattern.permute.xlu0 0
    %591 = vperm.xlu0 %590, %v557
    %v592 = vpop.permute.xlu0 %591
    %595 = vset.pattern.permute.xlu0 0
    %596 = vperm.xlu0 %595, %v558
    %v597 = vpop.permute.xlu0 %596
    %v607 = vunpack.c.l.b16 %v529
    %v608 = vunpack.c.l.b16 %v530
    %v609 = vunpack.c.l.b16 %v531
    %v610 = vunpack.c.l.b16 %v532
    %v611 = vunpack.c.l.b16 %v533
    %v612 = vunpack.c.l.b16 %v534
    %v613 = vunpack.c.l.b16 %v535
    %v614 = vunpack.c.l.b16 %v536
    %v615 = vpack.c.b16 %v608, %v607
    %v616 = vpack.c.b16 %v610, %v609
    %v617 = vpack.c.b16 %v612, %v611
    %v618 = vpack.c.b16 %v614, %v613
    %v633 = vunpack.c.l.b16 %v537
    %v634 = vunpack.c.l.b16 %v538
    %v635 = vunpack.c.l.b16 %v539
    %v636 = vunpack.c.l.b16 %v540
    %v637 = vunpack.c.l.b16 %v541
    %v638 = vunpack.c.l.b16 %v542
    %v639 = vunpack.c.l.b16 %v543
    %v640 = vunpack.c.l.b16 %v544
    %v641 = vunpack.c.l.b16 %v545
    %v642 = vunpack.c.l.b16 %v546
    %v643 = vunpack.c.l.b16 %v547
    %v644 = vunpack.c.l.b16 %v548
    %v645 = vunpack.c.l.b16 %v549
    %v646 = vunpack.c.l.b16 %v550
    %v647 = vpack.c.b16 %v634, %v633
    %v648 = vpack.c.b16 %v636, %v635
    %v649 = vpack.c.b16 %v638, %v637
    %v650 = vpack.c.b16 %v640, %v639
    %v651 = vpack.c.b16 %v642, %v641
    %v652 = vpack.c.b16 %v644, %v643
    %v653 = vpack.c.b16 %v646, %v645
    %vm661 = vcmask 916480
    %v663 = vsel %vm661, %v615, 0
    %v666 = vsel %vm661, %v616, 0
    %v669 = vsel %vm661, %v617, 0
    %v672 = vsel %vm661, %v618, 0
    %674 = vmatprep.subr.bf16.mxu0 0
    %675 = vmatpush1.bf16.msra.mxu0 0
    %676 = vmatprep.subr.bf16.mxu0 0
    %677 = vmatpush1.bf16.msra.mxu0 %v653
    %678 = vmatprep.subr.bf16.mxu0 0
    %679 = vmatpush1.bf16.msra.mxu0 %v652
    %680 = vmatprep.subr.bf16.mxu0 0
    %681 = vmatpush1.bf16.msra.mxu0 %v651
    %682 = vmatprep.subr.bf16.mxu0 0
    %683 = vmatpush1.bf16.msra.mxu0 %v650
    %684 = vmatprep.subr.bf16.mxu0 0
    %685 = vmatpush1.bf16.msra.mxu0 %v649
    %686 = vmatprep.subr.bf16.mxu0 0
    %687 = vmatpush1.bf16.msra.mxu0 %v648
    %688 = vmatprep.subr.bf16.mxu0 0
    %689 = vmatpush1.bf16.msra.mxu0 %v647
    %690 = vmatprep.subr.bf16.mxu0 0
    %691 = vmatpush2.bf16.msra.mxu0 0
    %692 = vmatprep.subr.bf16.mxu0 0
    %693 = vmatpush2.bf16.msra.mxu0 0
    %694 = vmatprep.subr.bf16.mxu0 0
    %695 = vmatpush2.bf16.msra.mxu0 0
    %696 = vmatprep.subr.bf16.mxu0 0
    %697 = vmatpush2.bf16.msra.mxu0 0
    %698 = vmatprep.subr.bf16.mxu0 0
    %699 = vmatpush2.bf16.msra.mxu0 0
    %700 = vmatprep.subr.bf16.mxu0 0
    %701 = vmatpush2.bf16.msra.mxu0 0
    %702 = vmatprep.subr.bf16.mxu0 0
    %703 = vmatpush2.bf16.msra.mxu0 0
    %704 = vmatprep.subr.bf16.mxu0 0
    %705 = vmatpush2.bf16.msra.mxu0 0
    %706 = vmatprep.mubr.bf16.mxu0 0
    %707 = vmatmul.mubr.bf16.gmra.mxu0 %v663
    %v708 = vpop.f32.mrf.mxu0
    %v709 = vadd.f32 %v562, %v708
    %v710 = vpop.f32.mrf.mxu0
    %v711 = vpop.f32.mrf.mxu0
    %v712 = vadd.f32 %v567, %v711
    %v713 = vpop.f32.mrf.mxu0
    %714 = vmatprep.mubr.bf16.mxu0 0
    %715 = vmatmul.mubr.bf16.gmra.mxu0 %v666
    %v716 = vpop.f32.mrf.mxu0
    %v717 = vadd.f32 %v572, %v716
    %v718 = vpop.f32.mrf.mxu0
    %v719 = vpop.f32.mrf.mxu0
    %v720 = vadd.f32 %v577, %v719
    %v721 = vpop.f32.mrf.mxu0
    %722 = vmatprep.mubr.bf16.mxu0 0
    %723 = vmatmul.mubr.bf16.gmra.mxu0 %v669
    %v724 = vpop.f32.mrf.mxu0
    %v725 = vadd.f32 %v582, %v724
    %v726 = vpop.f32.mrf.mxu0
    %v727 = vpop.f32.mrf.mxu0
    %v728 = vadd.f32 %v587, %v727
    %v729 = vpop.f32.mrf.mxu0
    %730 = vmatprep.mubr.bf16.mxu0 0
    %731 = vmatmul.mubr.bf16.gmra.mxu0 %v672
    %v732 = vpop.f32.mrf.mxu0
    %v733 = vadd.f32 %v592, %v732
    %v734 = vpop.f32.mrf.mxu0
    %v735 = vpop.f32.mrf.mxu0
    %v736 = vadd.f32 %v597, %v735
    %v737 = vpop.f32.mrf.mxu0
    %738 = vdwg.mxu0
    %v739 = vld [vmem:[%s8] sm:$0xf]
    %v740 = vld [vmem:[%s8 + $0x4] sm:$0xf]
    %v741 = vld [vmem:[%s8 + $0x8] sm:$0xf]
    %v742 = vld [vmem:[%s8 + $0xc] sm:$0xf]
    %v743 = vunpack.c.l.bf16 %v739
    %v744 = vunpack.c.l.bf16 %v740
    %v745 = vunpack.c.l.bf16 %v741
    %v746 = vunpack.c.l.bf16 %v742
    %vm747 = vcmask 261120
    %v749 = vsel %vm747, %v709, 0
    %v752 = vsel %vm747, %v712, 0
    %v755 = vsel %vm747, %v717, 0
    %v758 = vsel %vm747, %v720, 0
    %v761 = vsel %vm747, %v725, 0
    %v764 = vsel %vm747, %v728, 0
    %v767 = vsel %vm747, %v733, 0
    %v770 = vsel %vm747, %v736, 0
    %772 = vmatprep.subr.mxu0 0.0
    %773 = vmatpush1.msra.mxu0 0.0
    %774 = vmatprep.subr.mxu0 0.0
    %775 = vmatpush1.msra.mxu0 0.0
    %776 = vmatprep.subr.mxu0 0.0
    %777 = vmatpush1.msra.mxu0 0.0
    %778 = vmatprep.subr.mxu0 0.0
    %779 = vmatpush1.msra.mxu0 0.0
    %780 = vmatprep.subr.mxu0 0.0
    %781 = vmatpush1.msra.mxu0 0.0
    %782 = vmatprep.subr.mxu0 0.0
    %783 = vmatpush1.msra.mxu0 0.0
    %784 = vmatprep.subr.mxu0 0.0
    %785 = vmatpush1.msra.mxu0 0.0
    %786 = vmatprep.subr.mxu0 0.0
    %787 = vmatpush1.msra.mxu0 0.0
    %788 = vmatprep.subr.mxu0 0.0
    %789 = vmatpush1.msra.mxu0 0.0
    %790 = vmatprep.subr.mxu0 0.0
    %791 = vmatpush1.msra.mxu0 0.0
    %792 = vmatprep.subr.mxu0 0.0
    %793 = vmatpush1.msra.mxu0 0.0
    %794 = vmatprep.subr.mxu0 0.0
    %795 = vmatpush1.msra.mxu0 0.0
    %796 = vmatprep.subr.mxu0 0.0
    %797 = vmatpush1.msra.mxu0 %v746
    %798 = vmatprep.subr.mxu0 0.0
    %799 = vmatpush1.msra.mxu0 %v745
    %800 = vmatprep.subr.mxu0 0.0
    %801 = vmatpush1.msra.mxu0 %v744
    %802 = vmatprep.subr.mxu0 0.0
    %803 = vmatpush1.msra.mxu0 %v743
    %804 = vmatprep.subr.mxu0 0.0
    %805 = vmatpush2.msra.mxu0 0.0
    %806 = vmatprep.subr.mxu0 0.0
    %807 = vmatpush2.msra.mxu0 0.0
    %808 = vmatprep.subr.mxu0 0.0
    %809 = vmatpush2.msra.mxu0 0.0
    %810 = vmatprep.subr.mxu0 0.0
    %811 = vmatpush2.msra.mxu0 0.0
    %812 = vmatprep.subr.mxu0 0.0
    %813 = vmatpush2.msra.mxu0 0.0
    %814 = vmatprep.subr.mxu0 0.0
    %815 = vmatpush2.msra.mxu0 0.0
    %816 = vmatprep.subr.mxu0 0.0
    %817 = vmatpush2.msra.mxu0 0.0
    %818 = vmatprep.subr.mxu0 0.0
    %819 = vmatpush2.msra.mxu0 0.0
    %820 = vmatprep.subr.mxu0 0.0
    %821 = vmatpush2.msra.mxu0 0.0
    %822 = vmatprep.subr.mxu0 0.0
    %823 = vmatpush2.msra.mxu0 0.0
    %824 = vmatprep.subr.mxu0 0.0
    %825 = vmatpush2.msra.mxu0 0.0
    %826 = vmatprep.subr.mxu0 0.0
    %827 = vmatpush2.msra.mxu0 0.0
    %828 = vmatprep.subr.mxu0 0.0
    %829 = vmatpush2.msra.mxu0 0.0
    %830 = vmatprep.subr.mxu0 0.0
    %831 = vmatpush2.msra.mxu0 0.0
    %832 = vmatprep.subr.mxu0 0.0
    %833 = vmatpush2.msra.mxu0 0.0
    %834 = vmatprep.subr.mxu0 0.0
    %835 = vmatpush2.msra.mxu0 0.0
    %836 = vmatprep.mubr.f32.mxu0 0.0
    %837 = vmatmul.mubr.f32.gmra.mxu0 %v749
    %v838 = vpop.f32.mrf.mxu0
    %v839 = vadd.f32 0.0, %v838
    %v840 = vpop.f32.mrf.mxu0
    %841 = vmatprep.mubr.f32.mxu0 0.0
    %842 = vmatmul.mubr.f32.gmra.mxu0 %v752
    %v843 = vpop.f32.mrf.mxu0
    %v844 = vadd.f32 0.0, %v843
    %v845 = vpop.f32.mrf.mxu0
    %846 = vmatprep.mubr.f32.mxu0 0.0
    %847 = vmatmul.mubr.f32.gmra.mxu0 %v755
    %v848 = vpop.f32.mrf.mxu0
    %v849 = vadd.f32 0.0, %v848
    %v850 = vpop.f32.mrf.mxu0
    %851 = vmatprep.mubr.f32.mxu0 0.0
    %852 = vmatmul.mubr.f32.gmra.mxu0 %v758
    %v853 = vpop.f32.mrf.mxu0
    %v854 = vadd.f32 0.0, %v853
    %v855 = vpop.f32.mrf.mxu0
    %856 = vmatprep.mubr.f32.mxu0 0.0
    %857 = vmatmul.mubr.f32.gmra.mxu0 %v761
    %v858 = vpop.f32.mrf.mxu0
    %v859 = vadd.f32 0.0, %v858
    %v860 = vpop.f32.mrf.mxu0
    %861 = vmatprep.mubr.f32.mxu0 0.0
    %862 = vmatmul.mubr.f32.gmra.mxu0 %v764
    %v863 = vpop.f32.mrf.mxu0
    %v864 = vadd.f32 0.0, %v863
    %v865 = vpop.f32.mrf.mxu0
    %866 = vmatprep.mubr.f32.mxu0 0.0
    %867 = vmatmul.mubr.f32.gmra.mxu0 %v767
    %v868 = vpop.f32.mrf.mxu0
    %v869 = vadd.f32 0.0, %v868
    %v870 = vpop.f32.mrf.mxu0
    %871 = vmatprep.mubr.f32.mxu0 0.0
    %872 = vmatmul.mubr.f32.gmra.mxu0 %v770
    %v873 = vpop.f32.mrf.mxu0
    %v874 = vadd.f32 0.0, %v873
    %v875 = vpop.f32.mrf.mxu0
    %876 = vdwg.mxu0
    %v877 = vadd.f32 %v503, %v521
    %v878 = vadd.f32 %v504, %v522
    %v879 = vadd.f32 %v505, %v523
    %v880 = vadd.f32 %v506, %v524
    %v881 = vadd.f32 %v507, %v525
    %v882 = vadd.f32 %v508, %v526
    %v883 = vadd.f32 %v509, %v527
    %v884 = vadd.f32 %v510, %v528
    %v885 = vadd.f32 %v877, %v839
    %v886 = vadd.f32 %v878, %v844
    %v887 = vadd.f32 %v879, %v849
    %v888 = vadd.f32 %v880, %v854
    %v889 = vadd.f32 %v881, %v859
    %v890 = vadd.f32 %v882, %v864
    %v891 = vadd.f32 %v883, %v869
    %v892 = vadd.f32 %v884, %v874
    %893 = vst [vmem:[%s9] sm:$0xff] %v885
    %894 = vst [vmem:[%s9 + $0x8] sm:$0xff] %v886
    %895 = vst [vmem:[%s9 + $0x10] sm:$0xff] %v887
    %896 = vst [vmem:[%s9 + $0x18] sm:$0xff] %v888
    %897 = vst [vmem:[%s9 + $0x20] sm:$0xff] %v889
    %898 = vst [vmem:[%s9 + $0x28] sm:$0xff] %v890
    %899 = vst [vmem:[%s9 + $0x30] sm:$0xff] %v891
    %900 = vst [vmem:[%s9 + $0x38] sm:$0xff] %v892
    // Predicated region
    $region42: #{_lambda_.1} parent=1 // pred_check
      _
    $region43: #{_lambda_.1} parent=1 // pred_check_branch
      %902 = sbr.rel (0) target = $region45
    $region44: #{_lambda_.1} parent=1 // pred_region
      _
    $region45: #{_lambda_.1} parent=1 // pred_fallthru
      _
    // Predicated region
    $region46: #{_lambda_.1} parent=1 // pred_check
      _
    $region47: #{_lambda_.1} parent=1 // pred_check_branch
      %904 = sbr.rel (0) target = $region49
    $region48: #{_lambda_.1} parent=1 // pred_region
      _
    $region49: #{_lambda_.1} parent=1 // pred_fallthru
      _
    %905 = vsyncpa [#allocation3], 1

</llo_original>
